<compile_context>
chip_gen: v6e
topology: v6e:2x2x1
jax: 0.10.0
libtpu: 0.0.40
codegen_flags: <defaults>
</compile_context>

<pallas_src>
import functools

import jax
import jax.numpy as jnp
from jax import lax
from jax.experimental import pallas as pl
from jax.experimental.pallas import tpu as pltpu


def _round_up(v, m):
    return (v + m - 1) // m * m


def _pick_tile(n_pad, target):
    """Largest multiple of 128 <= target that divides n_pad (n_pad % 128 == 0)."""
    t = max((min(target, n_pad) // 128) * 128, 128)
    while n_pad % t:
        t -= 128
    return t


def _graph_conv_kernel(a_ref, x_ref, w_ref, b_ref, o_ref, acc_ref,
                       *, batch, fin_pad, fout_pad, tk):
    # a_ref  : (TM, TK)              bf16   A_hat row/col tile
    # x_ref  : (N_pad, B*Fin_pad)    bf16   whole folded X, resident in VMEM
    # w_ref  : (Fin_pad, Fout_pad)   f32
    # b_ref  : (1, Fout_pad)         f32
    # o_ref  : (TM, B*Fout_pad)      f32    lane-dense output slab
    # acc_ref: (TM, B*Fin_pad)       f32    aggregation accumulator
    k = pl.program_id(1)

    @pl.when(k == 0)
    def _init():
        acc_ref[...] = jnp.zeros_like(acc_ref)

    # Aggregation: (TM, TK) @ (TK, B*Fin_pad) -> (TM, B*Fin_pad), f32 accum.
    start = pl.multiple_of(k * tk, tk)
    x_tile = x_ref[pl.ds(start, tk), :]
    acc_ref[...] += jnp.dot(a_ref[...], x_tile,
                            preferred_element_type=jnp.float32)

    @pl.when(k == pl.num_programs(1) - 1)
    def _finalize():
        # Projection + bias once per row tile, per batch element (static loop,
        # all slices on 128-lane boundaries).
        acc = acc_ref[...]
        w = w_ref[...]
        b = b_ref[...]
        for bi in range(batch):
            proj = jnp.dot(acc[:, bi * fin_pad:(bi + 1) * fin_pad], w,
                           preferred_element_type=jnp.float32)
            o_ref[:, bi * fout_pad:(bi + 1) * fout_pad] = \
                (proj + b).astype(o_ref.dtype)


def graph_conv_pallas(x, a_hat, weight, bias):
    B, N, Fin = x.shape
    Fout = weight.shape[1]

    # Padded / tiled sizes (all lane dims multiples of 128).
    N_pad = _round_up(max(N, 128), 128)
    Fin_pad = _round_up(max(Fin, 128), 128)
    Fout_pad = _round_up(max(Fout, 128), 128)
    bf_in = B * Fin_pad
    bf_out = B * Fout_pad

    # Keep >= 2 row tiles when the graph allows it (v7x megacore); reduction
    # tile as large as practical.
    TM = _pick_tile(N_pad, min(1024, max(128, N_pad // 2)))
    TK = _pick_tile(N_pad, 1024)

    # Cast to bf16 first, then pad (half-size transient buffers).
    a_p = (jnp.zeros((N_pad, N_pad), jnp.bfloat16)
           .at[:N, :N].set(a_hat.astype(jnp.bfloat16)))
    x_p = (jnp.zeros((B, N_pad, Fin_pad), jnp.bfloat16)
           .at[:, :N, :Fin].set(x.astype(jnp.bfloat16)))
    # Fold batch into lanes: (B, N_pad, Fin_pad) -> (N_pad, B*Fin_pad).
    x_fold = x_p.transpose(1, 0, 2).reshape(N_pad, bf_in)
    w_p = jnp.zeros((Fin_pad, Fout_pad), jnp.float32).at[:Fin, :Fout].set(weight)
    b_p = jnp.zeros((1, Fout_pad), jnp.float32).at[0, :Fout].set(bias)

    # VMEM budget (double-buffered A / out, resident X, acc scratch) + margin,
    # capped below v7x's 64 MiB physical VMEM.
    vmem_bytes = (2 * TM * TK * 2            # A tiles (bf16, double buffered)
                  + 2 * N_pad * bf_in * 2    # folded X (bf16)
                  + 2 * Fin_pad * Fout_pad * 4 + 2 * Fout_pad * 4
                  + 2 * TM * bf_out * 4      # out tiles (f32, double buffered)
                  + TM * bf_in * 4)          # acc scratch
    vmem_limit = int(min(max(vmem_bytes + (8 << 20), 32 << 20), 48 << 20))

    kernel = functools.partial(_graph_conv_kernel, batch=B, fin_pad=Fin_pad,
                               fout_pad=Fout_pad, tk=TK)

    out = pl.pallas_call(
        kernel,
        out_shape=jax.ShapeDtypeStruct((N_pad, bf_out), jnp.float32),
        grid_spec=pltpu.PrefetchScalarGridSpec(
            num_scalar_prefetch=0,
            grid=(N_pad // TM, N_pad // TK),
            in_specs=[
                pl.BlockSpec((TM, TK), lambda i, k: (i, k)),          # A_hat
                pl.BlockSpec((N_pad, bf_in), lambda i, k: (0, 0)),    # X (resident)
                pl.BlockSpec((Fin_pad, Fout_pad), lambda i, k: (0, 0)),
                pl.BlockSpec((1, Fout_pad), lambda i, k: (0, 0)),
            ],
            out_specs=pl.BlockSpec((TM, bf_out), lambda i, k: (i, 0)),
            scratch_shapes=[pltpu.VMEM((TM, bf_in), jnp.float32)],
        ),
        compiler_params=pltpu.CompilerParams(
            dimension_semantics=("parallel", "arbitrary"),
            vmem_limit_bytes=vmem_limit,
        ),
    )(a_p, x_fold, w_p, b_p)

    # Unfold: (N_pad, B*Fout_pad) -> (B, N, Fout).
    out = out.reshape(N_pad, B, Fout_pad).transpose(1, 0, 2)
    return out[:, :N, :Fout]


def build_normalized_adjacency(edge_index, edge_weight, num_nodes):
    """Glue: add self loops, compute D^{-1/2} (I+A) D^{-1/2} as a dense (N,N)."""
    row, col = edge_index
    if edge_weight is None:
        edge_weight = jnp.ones((row.shape[0],), jnp.float32)
    loop = jnp.arange(num_nodes, dtype=row.dtype)
    row = jnp.concatenate([row, loop])
    col = jnp.concatenate([col, loop])
    edge_weight = jnp.concatenate(
        [edge_weight, jnp.ones((num_nodes,), jnp.float32)])
    deg = jnp.zeros((num_nodes,), jnp.float32).at[row].add(edge_weight)
    deg_inv_sqrt = jnp.where(deg > 0, lax.rsqrt(jnp.maximum(deg, 1e-30)), 0.0)
    lap = deg_inv_sqrt[row] * edge_weight * deg_inv_sqrt[col]
    a_hat = jnp.zeros((num_nodes, num_nodes), jnp.float32).at[row, col].add(lap)
    return a_hat


def init_params(key, in_features, out_features):
    # kaiming_normal_(a=0, mode='fan_in')  -> std = sqrt(2 / fan_in)
    std = (2.0 / in_features) ** 0.5
    weight = std * jax.random.normal(key, (in_features, out_features),
                                     jnp.float32)
    bias = jnp.zeros((out_features,), jnp.float32)
    return weight, bias


def graph_conv_reference(x, a_hat, weight, bias):
    xw = jnp.einsum("bnf,fo->bno", x, weight, precision=lax.Precision.HIGHEST)
    return jnp.einsum("nm,bmo->bno", a_hat, xw,
                      precision=lax.Precision.HIGHEST) + bias


if __name__ == "__main__":
    key = jax.random.PRNGKey(0)
    k_w, k_x, k_ew = jax.random.split(key, 3)

    batch, num_nodes = 2, 16
    in_features, out_features = 8, 32

    weight, bias = init_params(k_w, in_features, out_features)
    x = jax.random.normal(k_x, (batch, num_nodes, in_features), jnp.float32)

    # deterministic small graph: bidirectional ring
    src = jnp.arange(num_nodes, dtype=jnp.int32)
    dst = (src + 1) % num_nodes
    edge_index = jnp.stack([jnp.concatenate([src, dst]),
                            jnp.concatenate([dst, src])])
    edge_weight = jax.random.uniform(k_ew, (edge_index.shape[1],),
                                     jnp.float32, 0.5, 1.5)

    a_hat = build_normalized_adjacency(edge_index, edge_weight, num_nodes)

    out = graph_conv_pallas(x, a_hat, weight, bias)
    out = jax.block_until_ready(out)
    assert out.shape == (batch, num_nodes, out_features)

    # Strict check vs. a reference that quantizes the same MXU inputs to bf16
    # (kernel accumulates in f32, so only summation order differs).
    ref_q = graph_conv_reference(
        x.astype(jnp.bfloat16).astype(jnp.float32),
        a_hat.astype(jnp.bfloat16).astype(jnp.float32),
        weight, bias)
    assert jnp.allclose(out, ref_q, atol=1e-3, rtol=1e-3), \
        float(jnp.max(jnp.abs(out - ref_q)))

    # Loose check vs. the full-f32 reference (bf16 input rounding tolerance).
    ref = graph_conv_reference(x, a_hat, weight, bias)
    assert jnp.allclose(out, ref, atol=3e-2, rtol=3e-2), \
        float(jnp.max(jnp.abs(out - ref)))

    print("KERNEL_OK")
</pallas_src>

<mosaic_0001>
module attributes {stable_mosaic.version = 11 : i64} {
  func.func @_graph_conv_kernel(%arg0: i32, %arg1: i32, %arg2: memref<128x128xbf16, #tpu.memory_space<vmem>>, %arg3: memref<128x256xbf16, #tpu.memory_space<vmem>>, %arg4: memref<128x128xf32, #tpu.memory_space<vmem>>, %arg5: memref<1x128xf32, #tpu.memory_space<vmem>>, %arg6: memref<128x256xf32, #tpu.memory_space<vmem>>, %arg7: memref<128x256xf32, #tpu.memory_space<vmem>>) attributes {dimension_semantics = [#tpu.dimension_semantics<parallel>, #tpu.dimension_semantics<arbitrary>], iteration_bounds = array<i64: 1, 1>, scalar_prefetch = 0 : i64, scratch_operands = 1 : i64, tpu.core_type = #tpu.core_type<tc>, window_params = [{transform_indices = @transform_0, window_bounds = array<i64: 128, 128>}, {pipeline_mode = #tpu.pipeline_mode<synchronous>, transform_indices = @transform_1, window_bounds = array<i64: 128, 256>}, {pipeline_mode = #tpu.pipeline_mode<synchronous>, transform_indices = @transform_2, window_bounds = array<i64: 128, 128>}, {pipeline_mode = #tpu.pipeline_mode<synchronous>, transform_indices = @transform_3, window_bounds = array<i64: 1, 128>}, {transform_indices = @transform_4, window_bounds = array<i64: 128, 256>}]} {
    %c0_i32 = arith.constant 0 : i32
    %0 = arith.cmpi eq, %arg1, %c0_i32 : i32
    %1 = arith.extui %0 : i1 to i32
    %c0_i32_0 = arith.constant 0 : i32
    %2 = arith.cmpi ne, %1, %c0_i32_0 : i32
    scf.if %2 {
      %cst_9 = arith.constant 0.000000e+00 : f32
      %15 = vector.broadcast %cst_9 : f32 to vector<128x256xf32>
      %c0_10 = arith.constant 0 : index
      %c0_11 = arith.constant 0 : index
      %16 = vector.load %arg7[%c0_10, %c0_11] : memref<128x256xf32, #tpu.memory_space<vmem>>, vector<128x256xf32>
      tpu.vector_store %arg7[%c0_10, %c0_11], %15 {strides = array<i32>} : memref<128x256xf32, #tpu.memory_space<vmem>>, vector<128x256xf32>,
    } else {
    }
    %c128_i32 = arith.constant 128 : i32
    %3 = arith.muli %arg1, %c128_i32 : i32
    %4 = tpu.assume_multiple %3, 128 : i32
    %5 = arith.index_cast %4 : i32 to index
    %c0 = arith.constant 0 : index
    %6 = vector.load %arg3[%5, %c0] : memref<128x256xbf16, #tpu.memory_space<vmem>>, vector<128x256xbf16>
    %c0_1 = arith.constant 0 : index
    %c0_2 = arith.constant 0 : index
    %7 = vector.load %arg7[%c0_1, %c0_2] : memref<128x256xf32, #tpu.memory_space<vmem>>, vector<128x256xf32>
    %c0_3 = arith.constant 0 : index
    %c0_4 = arith.constant 0 : index
    %8 = vector.load %arg2[%c0_3, %c0_4] : memref<128x128xbf16, #tpu.memory_space<vmem>>, vector<128x128xbf16>
    %cst = arith.constant dense<0.000000e+00> : vector<128x256xf32>
    %9 = tpu.matmul %8, %6, %cst {dimension_numbers = #tpu.dot_dimension_numbers<[1], [0], [0], [1], [0, 0, 1, 1], [], []>} : vector<128x128xbf16>, vector<128x256xbf16>, vector<128x256xf32> -> vector<128x256xf32>
    %10 = arith.addf %7, %9 : vector<128x256xf32>
    %c0_5 = arith.constant 0 : index
    %c0_6 = arith.constant 0 : index
    %11 = vector.load %arg7[%c0_5, %c0_6] : memref<128x256xf32, #tpu.memory_space<vmem>>, vector<128x256xf32>
    tpu.vector_store %arg7[%c0_5, %c0_6], %10 {strides = array<i32>} : memref<128x256xf32, #tpu.memory_space<vmem>>, vector<128x256xf32>,
    %c0_i32_7 = arith.constant 0 : i32
    %12 = arith.cmpi eq, %arg1, %c0_i32_7 : i32
    %13 = arith.extui %12 : i1 to i32
    %c0_i32_8 = arith.constant 0 : i32
    %14 = arith.cmpi ne, %13, %c0_i32_8 : i32
    scf.if %14 {
      %c0_9 = arith.constant 0 : index
      %c0_10 = arith.constant 0 : index
      %15 = vector.load %arg7[%c0_9, %c0_10] : memref<128x256xf32, #tpu.memory_space<vmem>>, vector<128x256xf32>
      %c0_11 = arith.constant 0 : index
      %c0_12 = arith.constant 0 : index
      %16 = vector.load %arg4[%c0_11, %c0_12] : memref<128x128xf32, #tpu.memory_space<vmem>>, vector<128x128xf32>
      %c0_13 = arith.constant 0 : index
      %c0_14 = arith.constant 0 : index
      %17 = vector.load %arg5[%c0_13, %c0_14] : memref<1x128xf32, #tpu.memory_space<vmem>>, vector<1x128xf32>
      %18 = vector.extract_strided_slice %15 {offsets = [0, 0], sizes = [128, 128], strides = [1, 1]} : vector<128x256xf32> to vector<128x128xf32>
      %cst_15 = arith.constant dense<0.000000e+00> : vector<128x128xf32>
      %19 = tpu.matmul %18, %16, %cst_15 {dimension_numbers = #tpu.dot_dimension_numbers<[1], [0], [0], [1], [0, 0, 1, 1], [], []>} : vector<128x128xf32>, vector<128x128xf32>, vector<128x128xf32> -> vector<128x128xf32>
      %20 = vector.broadcast %17 : vector<1x128xf32> to vector<128x128xf32>
      %21 = arith.addf %19, %20 : vector<128x128xf32>
      %c0_16 = arith.constant 0 : index
      %c0_17 = arith.constant 0 : index
      %22 = vector.load %arg6[%c0_16, %c0_17] : memref<128x256xf32, #tpu.memory_space<vmem>>, vector<128x128xf32>
      tpu.vector_store %arg6[%c0_16, %c0_17], %21 {strides = array<i32>} : memref<128x256xf32, #tpu.memory_space<vmem>>, vector<128x128xf32>,
      %23 = vector.extract_strided_slice %15 {offsets = [0, 128], sizes = [128, 128], strides = [1, 1]} : vector<128x256xf32> to vector<128x128xf32>
      %cst_18 = arith.constant dense<0.000000e+00> : vector<128x128xf32>
      %24 = tpu.matmul %23, %16, %cst_18 {dimension_numbers = #tpu.dot_dimension_numbers<[1], [0], [0], [1], [0, 0, 1, 1], [], []>} : vector<128x128xf32>, vector<128x128xf32>, vector<128x128xf32> -> vector<128x128xf32>
      %25 = vector.broadcast %17 : vector<1x128xf32> to vector<128x128xf32>
      %26 = arith.addf %24, %25 : vector<128x128xf32>
      %c0_19 = arith.constant 0 : index
      %c128 = arith.constant 128 : index
      %27 = vector.load %arg6[%c0_19, %c128] : memref<128x256xf32, #tpu.memory_space<vmem>>, vector<128x128xf32>
      tpu.vector_store %arg6[%c0_19, %c128], %26 {strides = array<i32>} : memref<128x256xf32, #tpu.memory_space<vmem>>, vector<128x128xf32>,
    } else {
    }
    return
  }
  func.func @transform_0(%arg0: i32, %arg1: i32) -> (i32, i32) {
    %c0_i32 = arith.constant 0 : i32
    return %arg0, %arg1 : i32, i32
  }
  func.func @transform_1(%arg0: i32, %arg1: i32) -> (i32, i32) {
    %c0_i32 = arith.constant 0 : i32
    %c0_i32_0 = arith.constant 0 : i32
    %c0_i32_1 = arith.constant 0 : i32
    return %c0_i32, %c0_i32_0 : i32, i32
  }
  func.func @transform_2(%arg0: i32, %arg1: i32) -> (i32, i32) {
    %c0_i32 = arith.constant 0 : i32
    %c0_i32_0 = arith.constant 0 : i32
    %c0_i32_1 = arith.constant 0 : i32
    return %c0_i32, %c0_i32_0 : i32, i32
  }
  func.func @transform_3(%arg0: i32, %arg1: i32) -> (i32, i32) {
    %c0_i32 = arith.constant 0 : i32
    %c0_i32_0 = arith.constant 0 : i32
    %c0_i32_1 = arith.constant 0 : i32
    return %c0_i32, %c0_i32_0 : i32, i32
  }
  func.func @transform_4(%arg0: i32, %arg1: i32) -> (i32, i32) {
    %c0_i32 = arith.constant 0 : i32
    %c0_i32_0 = arith.constant 0 : i32
    return %arg0, %c0_i32 : i32, i32
  }
}

</mosaic_0001>

<llo_original>
// kernel: tpu_custom_call.1
$region0: #{tpu_custom_call.1}
  #allocation0 [shape = 'u32[]', space=smem, size = 0x4, offset = 0x4, fixed_abs, tag = 'smem constant byte address 0x4 - core index']
  #allocation1 [shape = 'u32[144,128]{1,0:T(1,128)}', space=vmem, size = 0x12000, scoped, tag = 'internal scratch']
  #allocation2 [shape = 'f32[128,256]{1,0:T(8,128)}', space=vmem, size = 0x20000, scoped, tag = 'scratch operand']
  %s0 = inlined_call_operand.hbm [shape: bf16[128,128], index: 0, kind: input, shape index: {}]
  %s1 = inlined_call_operand.hbm [shape: bf16[128,256], index: 1, kind: input, shape index: {}]
  %s2 = inlined_call_operand.hbm [shape: f32[128,128], index: 2, kind: input, shape index: {}]
  %s3 = inlined_call_operand.vmem [shape: f32[1,128], index: 3, kind: input, shape index: {}]
  %s4 = inlined_call_operand.hbm [shape: f32[128,256], index: 4, kind: output, shape index: {}]
  %s5 = sld [smem:[#allocation0]]
  $region46: #{tpu_custom_call.1} parent=0
    _
  %s7 = ssub.s32 1, %s5
  %s8 = scalar_select 0, %s7, %s5
  $region1: #{tpu_custom_call.1} parent=0
    #allocation3 [shape = 'u8[32768]{0}', space=vmem, size = 0x8000, scoped, tag = 'input window, operand 0, single buffered']
    #allocation4 [shape = 's32[1]{0}', space=sflag, size = 0x4, scoped, tag = 'scoped memory for tpu_custom_call.1']
    #allocation5 [shape = 's32[1]{0}', space=sflag, size = 0x4, scoped, tag = 'scoped memory for tpu_custom_call.1']
    #allocation6 [shape = 'u8[65536]{0}', space=vmem, size = 0x10000, scoped, tag = 'input window, operand 1, single buffered']
    #allocation7 [shape = 's32[1]{0}', space=sflag, size = 0x4, scoped, tag = 'scoped memory for tpu_custom_call.1']
    #allocation8 [shape = 'u8[65536]{0}', space=vmem, size = 0x10000, scoped, tag = 'input window, operand 2, single buffered']
    #allocation9 [shape = 'u8[131072]{0}', space=vmem, size = 0x20000, scoped, tag = 'output window, operand 0, single buffered']
    %9 = vsyncpa [#allocation4], 0
    %10 = vsyncpa [#allocation7], 0
    %11 = vsyncpa [#allocation5], 0
    // Predicated region
    $region2: #{tpu_custom_call.1} parent=1 // pred_check
      _
    $region3: #{tpu_custom_call.1} parent=1 // pred_check_branch
      %13 = sbr.rel (0) target = $region5
    $region4: #{tpu_custom_call.1} parent=1 // pred_region
      %s15 = ssub.s32 1024, 1024
      %16 = vsyncadd [#allocation4], %s15
      %s17 = sshll.u32 [#allocation3], 4
      %s18 = int_to_ptr.vmem [resolvable:$true] %s17
      %23 = dma.hbm_to_vmem [thread:$0]  %s0, 1024, %s18, [#allocation4], 64, 64, 4
    $region5: #{tpu_custom_call.1} parent=1 // pred_fallthru
      _
    // Predicated region
    $region6: #{tpu_custom_call.1} parent=1 // pred_check
      _
    $region7: #{tpu_custom_call.1} parent=1 // pred_check_branch
      %25 = sbr.rel (0) target = $region9
    $region8: #{tpu_custom_call.1} parent=1 // pred_region
      %s27 = ssub.s32 2048, 2048
      %28 = vsyncadd [#allocation7], %s27
      %s29 = sshll.u32 [#allocation6], 4
      %s30 = int_to_ptr.vmem [resolvable:$true] %s29
      %35 = dma.hbm_to_vmem [thread:$0]  %s1, 2048, %s30, [#allocation7], 128, 128, 8
    $region9: #{tpu_custom_call.1} parent=1 // pred_fallthru
      _
    // Predicated region
    $region10: #{tpu_custom_call.1} parent=1 // pred_check
      _
    $region11: #{tpu_custom_call.1} parent=1 // pred_check_branch
      %37 = sbr.rel (0) target = $region13
    $region12: #{tpu_custom_call.1} parent=1 // pred_region
      %s39 = ssub.s32 2048, 2048
      %40 = vsyncadd [#allocation7], %s39
      %s41 = sshll.u32 [#allocation8], 4
      %s42 = int_to_ptr.vmem [resolvable:$true] %s41
      %47 = dma.hbm_to_vmem [thread:$0]  %s2, 2048, %s42, [#allocation7], 128, 128, 8
    $region13: #{tpu_custom_call.1} parent=1 // pred_fallthru
      _
    // Predicated region
    $region14: #{tpu_custom_call.1} parent=1 // pred_check
      _
    $region15: #{tpu_custom_call.1} parent=1 // pred_check_branch
      %49 = sbr.rel (0) target = $region17
    $region16: #{tpu_custom_call.1} parent=1 // pred_region
      _
    $region17: #{tpu_custom_call.1} parent=1 // pred_fallthru
      _
    // Predicated region
    $region18: #{tpu_custom_call.1} parent=1 // pred_check
      _
    $region19: #{tpu_custom_call.1} parent=1 // pred_check_branch
      %51 = sbr.rel (0) target = $region21
    $region20: #{tpu_custom_call.1} parent=1 // pred_region
      %52 = dma.done [#allocation4], 1024
    $region21: #{tpu_custom_call.1} parent=1 // pred_fallthru
      _
    // Predicated region
    $region22: #{tpu_custom_call.1} parent=1 // pred_check
      _
    $region23: #{tpu_custom_call.1} parent=1 // pred_check_branch
      %54 = sbr.rel (0) target = $region25
    $region24: #{tpu_custom_call.1} parent=1 // pred_region
      %55 = dma.done [#allocation7], 2048
    $region25: #{tpu_custom_call.1} parent=1 // pred_fallthru
      _
    // Predicated region
    $region26: #{tpu_custom_call.1} parent=1 // pred_check
      _
    $region27: #{tpu_custom_call.1} parent=1 // pred_check_branch
      %57 = sbr.rel (0) target = $region29
    $region28: #{tpu_custom_call.1} parent=1 // pred_region
      %58 = dma.done [#allocation7], 2048
    $region29: #{tpu_custom_call.1} parent=1 // pred_fallthru
      _
    %p60 = scmp.eq.s32.totalorder 0, 0
    // Predicated region
    $region30: #{tpu_custom_call.1} parent=1 // pred_check
      %p61 = pneg %p60
    $region31: #{tpu_custom_call.1} parent=1 // pred_check_branch
      %63 = sbr.rel (%p61) target = $region33
    $region32: #{tpu_custom_call.1} parent=1 // pred_region
      %64 = vst [vmem:[#allocation2] sm:$0xff] 0.0
      %65 = vst [vmem:[#allocation2 + $0x8] sm:$0xff] 0.0
      %66 = vst [vmem:[#allocation2 + $0x10] sm:$0xff] 0.0
      %67 = vst [vmem:[#allocation2 + $0x18] sm:$0xff] 0.0
      %68 = vst [vmem:[#allocation2 + $0x20] sm:$0xff] 0.0
      %69 = vst [vmem:[#allocation2 + $0x28] sm:$0xff] 0.0
      %70 = vst [vmem:[#allocation2 + $0x30] sm:$0xff] 0.0
      %71 = vst [vmem:[#allocation2 + $0x38] sm:$0xff] 0.0
      %72 = vst [vmem:[#allocation2 + $0x40] sm:$0xff] 0.0
      %73 = vst [vmem:[#allocation2 + $0x48] sm:$0xff] 0.0
      %74 = vst [vmem:[#allocation2 + $0x50] sm:$0xff] 0.0
      %75 = vst [vmem:[#allocation2 + $0x58] sm:$0xff] 0.0
      %76 = vst [vmem:[#allocation2 + $0x60] sm:$0xff] 0.0
      %77 = vst [vmem:[#allocation2 + $0x68] sm:$0xff] 0.0
      %78 = vst [vmem:[#allocation2 + $0x70] sm:$0xff] 0.0
      %79 = vst [vmem:[#allocation2 + $0x78] sm:$0xff] 0.0
      %80 = vst [vmem:[#allocation2 + $0x80] sm:$0xff] 0.0
      %81 = vst [vmem:[#allocation2 + $0x88] sm:$0xff] 0.0
      %82 = vst [vmem:[#allocation2 + $0x90] sm:$0xff] 0.0
      %83 = vst [vmem:[#allocation2 + $0x98] sm:$0xff] 0.0
      %84 = vst [vmem:[#allocation2 + $0xa0] sm:$0xff] 0.0
      %85 = vst [vmem:[#allocation2 + $0xa8] sm:$0xff] 0.0
      %86 = vst [vmem:[#allocation2 + $0xb0] sm:$0xff] 0.0
      %87 = vst [vmem:[#allocation2 + $0xb8] sm:$0xff] 0.0
      %88 = vst [vmem:[#allocation2 + $0xc0] sm:$0xff] 0.0
      %89 = vst [vmem:[#allocation2 + $0xc8] sm:$0xff] 0.0
      %90 = vst [vmem:[#allocation2 + $0xd0] sm:$0xff] 0.0
      %91 = vst [vmem:[#allocation2 + $0xd8] sm:$0xff] 0.0
      %92 = vst [vmem:[#allocation2 + $0xe0] sm:$0xff] 0.0
      %93 = vst [vmem:[#allocation2 + $0xe8] sm:$0xff] 0.0
      %94 = vst [vmem:[#allocation2 + $0xf0] sm:$0xff] 0.0
      %95 = vst [vmem:[#allocation2 + $0xf8] sm:$0xff] 0.0
    $region33: #{tpu_custom_call.1} parent=1 // pred_fallthru
      _
    %s96 = smul.u32 0, 128
    %s97 = sshra.s32 %s96, 3
    %s98 = sand.u32 %s96, 7
    %s99 = smul.u32 %s97, 2
    %s100 = smul.addr %s99, 4
    %s101 = scalar_lea.vmem [#allocation6], %s100
    %v102 = vld [vmem:[%s101] sm:$0xff]
    %v103 = vld [vmem:[%s101 + $0x8] sm:$0xff]
    %v104 = vld [vmem:[%s101 + $0x10] sm:$0xff]
    %v105 = vld [vmem:[%s101 + $0x18] sm:$0xff]
    %v106 = vld [vmem:[%s101 + $0x20] sm:$0xff]
    %v107 = vld [vmem:[%s101 + $0x28] sm:$0xff]
    %v108 = vld [vmem:[%s101 + $0x30] sm:$0xff]
    %v109 = vld [vmem:[%s101 + $0x38] sm:$0xff]
    %v110 = vld [vmem:[%s101 + $0x40] sm:$0xff]
    %v111 = vld [vmem:[%s101 + $0x48] sm:$0xff]
    %v112 = vld [vmem:[%s101 + $0x50] sm:$0xff]
    %v113 = vld [vmem:[%s101 + $0x58] sm:$0xff]
    %v114 = vld [vmem:[%s101 + $0x60] sm:$0xff]
    %v115 = vld [vmem:[%s101 + $0x68] sm:$0xff]
    %v116 = vld [vmem:[%s101 + $0x70] sm:$0xff]
    %v117 = vld [vmem:[%s101 + $0x78] sm:$0xff]
    %v118 = vld [vmem:[#allocation2] sm:$0xff]
    %v119 = vld [vmem:[#allocation2 + $0x8] sm:$0xff]
    %v120 = vld [vmem:[#allocation2 + $0x10] sm:$0xff]
    %v121 = vld [vmem:[#allocation2 + $0x18] sm:$0xff]
    %v122 = vld [vmem:[#allocation2 + $0x20] sm:$0xff]
    %v123 = vld [vmem:[#allocation2 + $0x28] sm:$0xff]
    %v124 = vld [vmem:[#allocation2 + $0x30] sm:$0xff]
    %v125 = vld [vmem:[#allocation2 + $0x38] sm:$0xff]
    %v126 = vld [vmem:[#allocation2 + $0x40] sm:$0xff]
    %v127 = vld [vmem:[#allocation2 + $0x48] sm:$0xff]
    %v128 = vld [vmem:[#allocation2 + $0x50] sm:$0xff]
    %v129 = vld [vmem:[#allocation2 + $0x58] sm:$0xff]
    %v130 = vld [vmem:[#allocation2 + $0x60] sm:$0xff]
    %v131 = vld [vmem:[#allocation2 + $0x68] sm:$0xff]
    %v132 = vld [vmem:[#allocation2 + $0x70] sm:$0xff]
    %v133 = vld [vmem:[#allocation2 + $0x78] sm:$0xff]
    %v134 = vld [vmem:[#allocation2 + $0x80] sm:$0xff]
    %v135 = vld [vmem:[#allocation2 + $0x88] sm:$0xff]
    %v136 = vld [vmem:[#allocation2 + $0x90] sm:$0xff]
    %v137 = vld [vmem:[#allocation2 + $0x98] sm:$0xff]
    %v138 = vld [vmem:[#allocation2 + $0xa0] sm:$0xff]
    %v139 = vld [vmem:[#allocation2 + $0xa8] sm:$0xff]
    %v140 = vld [vmem:[#allocation2 + $0xb0] sm:$0xff]
    %v141 = vld [vmem:[#allocation2 + $0xb8] sm:$0xff]
    %v142 = vld [vmem:[#allocation2 + $0xc0] sm:$0xff]
    %v143 = vld [vmem:[#allocation2 + $0xc8] sm:$0xff]
    %v144 = vld [vmem:[#allocation2 + $0xd0] sm:$0xff]
    %v145 = vld [vmem:[#allocation2 + $0xd8] sm:$0xff]
    %v146 = vld [vmem:[#allocation2 + $0xe0] sm:$0xff]
    %v147 = vld [vmem:[#allocation2 + $0xe8] sm:$0xff]
    %v148 = vld [vmem:[#allocation2 + $0xf0] sm:$0xff]
    %v149 = vld [vmem:[#allocation2 + $0xf8] sm:$0xff]
    %v150 = vld [vmem:[#allocation3] sm:$0xf]
    %v151 = vld [vmem:[#allocation3 + $0x4] sm:$0xf]
    %v152 = vld [vmem:[#allocation3 + $0x8] sm:$0xf]
    %v153 = vld [vmem:[#allocation3 + $0xc] sm:$0xf]
    %v154 = vld [vmem:[#allocation3 + $0x10] sm:$0xf]
    %v155 = vld [vmem:[#allocation3 + $0x14] sm:$0xf]
    %v156 = vld [vmem:[#allocation3 + $0x18] sm:$0xf]
    %v157 = vld [vmem:[#allocation3 + $0x1c] sm:$0xf]
    %v158 = vld [vmem:[#allocation3 + $0x20] sm:$0xf]
    %v159 = vld [vmem:[#allocation3 + $0x24] sm:$0xf]
    %v160 = vld [vmem:[#allocation3 + $0x28] sm:$0xf]
    %v161 = vld [vmem:[#allocation3 + $0x2c] sm:$0xf]
    %v162 = vld [vmem:[#allocation3 + $0x30] sm:$0xf]
    %v163 = vld [vmem:[#allocation3 + $0x34] sm:$0xf]
    %v164 = vld [vmem:[#allocation3 + $0x38] sm:$0xf]
    %v165 = vld [vmem:[#allocation3 + $0x3c] sm:$0xf]
    %v182 = vunpack.c.l.b16 %v150
    %v183 = vunpack.c.l.b16 %v151
    %v184 = vunpack.c.l.b16 %v152
    %v185 = vunpack.c.l.b16 %v153
    %v186 = vunpack.c.l.b16 %v154
    %v187 = vunpack.c.l.b16 %v155
    %v188 = vunpack.c.l.b16 %v156
    %v189 = vunpack.c.l.b16 %v157
    %v190 = vunpack.c.l.b16 %v158
    %v191 = vunpack.c.l.b16 %v159
    %v192 = vunpack.c.l.b16 %v160
    %v193 = vunpack.c.l.b16 %v161
    %v194 = vunpack.c.l.b16 %v162
    %v195 = vunpack.c.l.b16 %v163
    %v196 = vunpack.c.l.b16 %v164
    %v197 = vunpack.c.l.b16 %v165
    %v198 = vpack.c.b16 %v183, %v182
    %v199 = vpack.c.b16 %v185, %v184
    %v200 = vpack.c.b16 %v187, %v186
    %v201 = vpack.c.b16 %v189, %v188
    %v202 = vpack.c.b16 %v191, %v190
    %v203 = vpack.c.b16 %v193, %v192
    %v204 = vpack.c.b16 %v195, %v194
    %v205 = vpack.c.b16 %v197, %v196
    %v230 = vunpack.c.l.b16 %v102
    %v231 = vunpack.c.h.b16 %v102
    %v232 = vunpack.c.l.b16 %v103
    %v233 = vunpack.c.h.b16 %v103
    %v234 = vunpack.c.l.b16 %v104
    %v235 = vunpack.c.h.b16 %v104
    %v236 = vunpack.c.l.b16 %v105
    %v237 = vunpack.c.h.b16 %v105
    %v238 = vunpack.c.l.b16 %v106
    %v239 = vunpack.c.h.b16 %v106
    %v240 = vunpack.c.l.b16 %v107
    %v241 = vunpack.c.h.b16 %v107
    %v242 = vunpack.c.l.b16 %v108
    %v243 = vunpack.c.h.b16 %v108
    %v244 = vunpack.c.l.b16 %v109
    %v245 = vunpack.c.h.b16 %v109
    %v246 = vunpack.c.l.b16 %v110
    %v247 = vunpack.c.h.b16 %v110
    %v248 = vunpack.c.l.b16 %v111
    %v249 = vunpack.c.h.b16 %v111
    %v250 = vunpack.c.l.b16 %v112
    %v251 = vunpack.c.h.b16 %v112
    %v252 = vunpack.c.l.b16 %v113
    %v253 = vunpack.c.h.b16 %v113
    %v254 = vunpack.c.l.b16 %v114
    %v255 = vunpack.c.h.b16 %v114
    %v256 = vunpack.c.l.b16 %v115
    %v257 = vunpack.c.h.b16 %v115
    %v258 = vunpack.c.l.b16 %v116
    %v259 = vunpack.c.h.b16 %v116
    %v260 = vunpack.c.l.b16 %v117
    %v261 = vunpack.c.h.b16 %v117
    %v262 = vpack.c.b16 %v232, %v230
    %v263 = vpack.c.b16 %v233, %v231
    %v264 = vpack.c.b16 %v236, %v234
    %v265 = vpack.c.b16 %v237, %v235
    %v266 = vpack.c.b16 %v240, %v238
    %v267 = vpack.c.b16 %v241, %v239
    %v268 = vpack.c.b16 %v244, %v242
    %v269 = vpack.c.b16 %v245, %v243
    %v270 = vpack.c.b16 %v248, %v246
    %v271 = vpack.c.b16 %v249, %v247
    %v272 = vpack.c.b16 %v252, %v250
    %v273 = vpack.c.b16 %v253, %v251
    %v274 = vpack.c.b16 %v256, %v254
    %v275 = vpack.c.b16 %v257, %v255
    %v276 = vpack.c.b16 %v260, %v258
    %v277 = vpack.c.b16 %v261, %v259
    %294 = vmatprep.subr.bf16.mxu0 %v277
    %295 = vmatpush1.bf16.msra.mxu0 %v276
    %296 = vmatprep.subr.bf16.mxu0 %v275
    %297 = vmatpush1.bf16.msra.mxu0 %v274
    %298 = vmatprep.subr.bf16.mxu0 %v273
    %299 = vmatpush1.bf16.msra.mxu0 %v272
    %300 = vmatprep.subr.bf16.mxu0 %v271
    %301 = vmatpush1.bf16.msra.mxu0 %v270
    %302 = vmatprep.subr.bf16.mxu0 %v269
    %303 = vmatpush1.bf16.msra.mxu0 %v268
    %304 = vmatprep.subr.bf16.mxu0 %v267
    %305 = vmatpush1.bf16.msra.mxu0 %v266
    %306 = vmatprep.subr.bf16.mxu0 %v265
    %307 = vmatpush1.bf16.msra.mxu0 %v264
    %308 = vmatprep.subr.bf16.mxu0 %v263
    %309 = vmatpush1.bf16.msra.mxu0 %v262
    %310 = vmatprep.subr.bf16.mxu0 0
    %311 = vmatpush2.bf16.msra.mxu0 0
    %312 = vmatprep.subr.bf16.mxu0 0
    %313 = vmatpush2.bf16.msra.mxu0 0
    %314 = vmatprep.subr.bf16.mxu0 0
    %315 = vmatpush2.bf16.msra.mxu0 0
    %316 = vmatprep.subr.bf16.mxu0 0
    %317 = vmatpush2.bf16.msra.mxu0 0
    %318 = vmatprep.subr.bf16.mxu0 0
    %319 = vmatpush2.bf16.msra.mxu0 0
    %320 = vmatprep.subr.bf16.mxu0 0
    %321 = vmatpush2.bf16.msra.mxu0 0
    %322 = vmatprep.subr.bf16.mxu0 0
    %323 = vmatpush2.bf16.msra.mxu0 0
    %324 = vmatprep.subr.bf16.mxu0 0
    %325 = vmatpush2.bf16.msra.mxu0 0
    %326 = vmatprep.mubr.bf16.mxu0 0
    %327 = vmatmul.mubr.bf16.gmra.mxu0 %v198
    %v328 = vpop.f32.mrf.mxu0
    %v329 = vadd.f32 0.0, %v328
    %v330 = vpop.f32.mrf.mxu0
    %v331 = vadd.f32 0.0, %v330
    %v332 = vpop.f32.mrf.mxu0
    %v333 = vadd.f32 0.0, %v332
    %v334 = vpop.f32.mrf.mxu0
    %v335 = vadd.f32 0.0, %v334
    %336 = vmatprep.mubr.bf16.mxu0 0
    %337 = vmatmul.mubr.bf16.gmra.mxu0 %v199
    %v338 = vpop.f32.mrf.mxu0
    %v339 = vadd.f32 0.0, %v338
    %v340 = vpop.f32.mrf.mxu0
    %v341 = vadd.f32 0.0, %v340
    %v342 = vpop.f32.mrf.mxu0
    %v343 = vadd.f32 0.0, %v342
    %v344 = vpop.f32.mrf.mxu0
    %v345 = vadd.f32 0.0, %v344
    %346 = vmatprep.mubr.bf16.mxu0 0
    %347 = vmatmul.mubr.bf16.gmra.mxu0 %v200
    %v348 = vpop.f32.mrf.mxu0
    %v349 = vadd.f32 0.0, %v348
    %v350 = vpop.f32.mrf.mxu0
    %v351 = vadd.f32 0.0, %v350
    %v352 = vpop.f32.mrf.mxu0
    %v353 = vadd.f32 0.0, %v352
    %v354 = vpop.f32.mrf.mxu0
    %v355 = vadd.f32 0.0, %v354
    %356 = vmatprep.mubr.bf16.mxu0 0
    %357 = vmatmul.mubr.bf16.gmra.mxu0 %v201
    %v358 = vpop.f32.mrf.mxu0
    %v359 = vadd.f32 0.0, %v358
    %v360 = vpop.f32.mrf.mxu0
    %v361 = vadd.f32 0.0, %v360
    %v362 = vpop.f32.mrf.mxu0
    %v363 = vadd.f32 0.0, %v362
    %v364 = vpop.f32.mrf.mxu0
    %v365 = vadd.f32 0.0, %v364
    %366 = vmatprep.mubr.bf16.mxu0 0
    %367 = vmatmul.mubr.bf16.gmra.mxu0 %v202
    %v368 = vpop.f32.mrf.mxu0
    %v369 = vadd.f32 0.0, %v368
    %v370 = vpop.f32.mrf.mxu0
    %v371 = vadd.f32 0.0, %v370
    %v372 = vpop.f32.mrf.mxu0
    %v373 = vadd.f32 0.0, %v372
    %v374 = vpop.f32.mrf.mxu0
    %v375 = vadd.f32 0.0, %v374
    %376 = vmatprep.mubr.bf16.mxu0 0
    %377 = vmatmul.mubr.bf16.gmra.mxu0 %v203
    %v378 = vpop.f32.mrf.mxu0
    %v379 = vadd.f32 0.0, %v378
    %v380 = vpop.f32.mrf.mxu0
    %v381 = vadd.f32 0.0, %v380
    %v382 = vpop.f32.mrf.mxu0
    %v383 = vadd.f32 0.0, %v382
    %v384 = vpop.f32.mrf.mxu0
    %v385 = vadd.f32 0.0, %v384
    %386 = vmatprep.mubr.bf16.mxu0 0
    %387 = vmatmul.mubr.bf16.gmra.mxu0 %v204
    %v388 = vpop.f32.mrf.mxu0
    %v389 = vadd.f32 0.0, %v388
    %v390 = vpop.f32.mrf.mxu0
    %v391 = vadd.f32 0.0, %v390
    %v392 = vpop.f32.mrf.mxu0
    %v393 = vadd.f32 0.0, %v392
    %v394 = vpop.f32.mrf.mxu0
    %v395 = vadd.f32 0.0, %v394
    %396 = vmatprep.mubr.bf16.mxu0 0
    %397 = vmatmul.mubr.bf16.gmra.mxu0 %v205
    %v398 = vpop.f32.mrf.mxu0
    %v399 = vadd.f32 0.0, %v398
    %v400 = vpop.f32.mrf.mxu0
    %v401 = vadd.f32 0.0, %v400
    %v402 = vpop.f32.mrf.mxu0
    %v403 = vadd.f32 0.0, %v402
    %v404 = vpop.f32.mrf.mxu0
    %v405 = vadd.f32 0.0, %v404
    %406 = vdwg.mxu0
    %v407 = vadd.f32 %v118, %v329
    %v408 = vadd.f32 %v119, %v331
    %v409 = vadd.f32 %v120, %v333
    %v410 = vadd.f32 %v121, %v335
    %v411 = vadd.f32 %v122, %v339
    %v412 = vadd.f32 %v123, %v341
    %v413 = vadd.f32 %v124, %v343
    %v414 = vadd.f32 %v125, %v345
    %v415 = vadd.f32 %v126, %v349
    %v416 = vadd.f32 %v127, %v351
    %v417 = vadd.f32 %v128, %v353
    %v418 = vadd.f32 %v129, %v355
    %v419 = vadd.f32 %v130, %v359
    %v420 = vadd.f32 %v131, %v361
    %v421 = vadd.f32 %v132, %v363
    %v422 = vadd.f32 %v133, %v365
    %v423 = vadd.f32 %v134, %v369
    %v424 = vadd.f32 %v135, %v371
    %v425 = vadd.f32 %v136, %v373
    %v426 = vadd.f32 %v137, %v375
    %v427 = vadd.f32 %v138, %v379
    %v428 = vadd.f32 %v139, %v381
    %v429 = vadd.f32 %v140, %v383
    %v430 = vadd.f32 %v141, %v385
    %v431 = vadd.f32 %v142, %v389
    %v432 = vadd.f32 %v143, %v391
    %v433 = vadd.f32 %v144, %v393
    %v434 = vadd.f32 %v145, %v395
    %v435 = vadd.f32 %v146, %v399
    %v436 = vadd.f32 %v147, %v401
    %v437 = vadd.f32 %v148, %v403
    %v438 = vadd.f32 %v149, %v405
    %439 = vst [vmem:[#allocation2] sm:$0xff] %v407
    %440 = vst [vmem:[#allocation2 + $0x8] sm:$0xff] %v408
    %441 = vst [vmem:[#allocation2 + $0x10] sm:$0xff] %v409
    %442 = vst [vmem:[#allocation2 + $0x18] sm:$0xff] %v410
    %443 = vst [vmem:[#allocation2 + $0x20] sm:$0xff] %v411
    %444 = vst [vmem:[#allocation2 + $0x28] sm:$0xff] %v412
    %445 = vst [vmem:[#allocation2 + $0x30] sm:$0xff] %v413
    %446 = vst [vmem:[#allocation2 + $0x38] sm:$0xff] %v414
    %447 = vst [vmem:[#allocation2 + $0x40] sm:$0xff] %v415
    %448 = vst [vmem:[#allocation2 + $0x48] sm:$0xff] %v416
    %449 = vst [vmem:[#allocation2 + $0x50] sm:$0xff] %v417
    %450 = vst [vmem:[#allocation2 + $0x58] sm:$0xff] %v418
    %451 = vst [vmem:[#allocation2 + $0x60] sm:$0xff] %v419
    %452 = vst [vmem:[#allocation2 + $0x68] sm:$0xff] %v420
    %453 = vst [vmem:[#allocation2 + $0x70] sm:$0xff] %v421
    %454 = vst [vmem:[#allocation2 + $0x78] sm:$0xff] %v422
    %455 = vst [vmem:[#allocation2 + $0x80] sm:$0xff] %v423
    %456 = vst [vmem:[#allocation2 + $0x88] sm:$0xff] %v424
    %457 = vst [vmem:[#allocation2 + $0x90] sm:$0xff] %v425
    %458 = vst [vmem:[#allocation2 + $0x98] sm:$0xff] %v426
    %459 = vst [vmem:[#allocation2 + $0xa0] sm:$0xff] %v427
    %460 = vst [vmem:[#allocation2 + $0xa8] sm:$0xff] %v428
    %461 = vst [vmem:[#allocation2 + $0xb0] sm:$0xff] %v429
    %462 = vst [vmem:[#allocation2 + $0xb8] sm:$0xff] %v430
    %463 = vst [vmem:[#allocation2 + $0xc0] sm:$0xff] %v431
    %464 = vst [vmem:[#allocation2 + $0xc8] sm:$0xff] %v432
    %465 = vst [vmem:[#allocation2 + $0xd0] sm:$0xff] %v433
    %466 = vst [vmem:[#allocation2 + $0xd8] sm:$0xff] %v434
    %467 = vst [vmem:[#allocation2 + $0xe0] sm:$0xff] %v435
    %468 = vst [vmem:[#allocation2 + $0xe8] sm:$0xff] %v436
    %469 = vst [vmem:[#allocation2 + $0xf0] sm:$0xff] %v437
    %470 = vst [vmem:[#allocation2 + $0xf8] sm:$0xff] %v438
    // Predicated region
    $region34: #{tpu_custom_call.1} parent=1 // pred_check
      %p471 = pneg %p60
    $region35: #{tpu_custom_call.1} parent=1 // pred_check_branch
      %473 = sbr.rel (%p471) target = $region37
    $region36: #{tpu_custom_call.1} parent=1 // pred_region
      %v474 = vld [vmem:[#allocation2] sm:$0xff]
      %v475 = vld [vmem:[#allocation2 + $0x8] sm:$0xff]
      %v476 = vld [vmem:[#allocation2 + $0x10] sm:$0xff]
      %v477 = vld [vmem:[#allocation2 + $0x18] sm:$0xff]
      %v478 = vld [vmem:[#allocation2 + $0x20] sm:$0xff]
      %v479 = vld [vmem:[#allocation2 + $0x28] sm:$0xff]
      %v480 = vld [vmem:[#allocation2 + $0x30] sm:$0xff]
      %v481 = vld [vmem:[#allocation2 + $0x38] sm:$0xff]
      %v482 = vld [vmem:[#allocation2 + $0x40] sm:$0xff]
      %v483 = vld [vmem:[#allocation2 + $0x48] sm:$0xff]
      %v484 = vld [vmem:[#allocation2 + $0x50] sm:$0xff]
      %v485 = vld [vmem:[#allocation2 + $0x58] sm:$0xff]
      %v486 = vld [vmem:[#allocation2 + $0x60] sm:$0xff]
      %v487 = vld [vmem:[#allocation2 + $0x68] sm:$0xff]
      %v488 = vld [vmem:[#allocation2 + $0x70] sm:$0xff]
      %v489 = vld [vmem:[#allocation2 + $0x78] sm:$0xff]
      %v490 = vld [vmem:[#allocation2 + $0x80] sm:$0xff]
      %v491 = vld [vmem:[#allocation2 + $0x88] sm:$0xff]
      %v492 = vld [vmem:[#allocation2 + $0x90] sm:$0xff]
      %v493 = vld [vmem:[#allocation2 + $0x98] sm:$0xff]
      %v494 = vld [vmem:[#allocation2 + $0xa0] sm:$0xff]
      %v495 = vld [vmem:[#allocation2 + $0xa8] sm:$0xff]
      %v496 = vld [vmem:[#allocation2 + $0xb0] sm:$0xff]
      %v497 = vld [vmem:[#allocation2 + $0xb8] sm:$0xff]
      %v498 = vld [vmem:[#allocation2 + $0xc0] sm:$0xff]
      %v499 = vld [vmem:[#allocation2 + $0xc8] sm:$0xff]
      %v500 = vld [vmem:[#allocation2 + $0xd0] sm:$0xff]
      %v501 = vld [vmem:[#allocation2 + $0xd8] sm:$0xff]
      %v502 = vld [vmem:[#allocation2 + $0xe0] sm:$0xff]
      %v503 = vld [vmem:[#allocation2 + $0xe8] sm:$0xff]
      %v504 = vld [vmem:[#allocation2 + $0xf0] sm:$0xff]
      %v505 = vld [vmem:[#allocation2 + $0xf8] sm:$0xff]
      %v506 = vld [vmem:[#allocation8] sm:$0xff]
      %v507 = vld [vmem:[#allocation8 + $0x8] sm:$0xff]
      %v508 = vld [vmem:[#allocation8 + $0x10] sm:$0xff]
      %v509 = vld [vmem:[#allocation8 + $0x18] sm:$0xff]
      %v510 = vld [vmem:[#allocation8 + $0x20] sm:$0xff]
      %v511 = vld [vmem:[#allocation8 + $0x28] sm:$0xff]
      %v512 = vld [vmem:[#allocation8 + $0x30] sm:$0xff]
      %v513 = vld [vmem:[#allocation8 + $0x38] sm:$0xff]
      %v514 = vld [vmem:[#allocation8 + $0x40] sm:$0xff]
      %v515 = vld [vmem:[#allocation8 + $0x48] sm:$0xff]
      %v516 = vld [vmem:[#allocation8 + $0x50] sm:$0xff]
      %v517 = vld [vmem:[#allocation8 + $0x58] sm:$0xff]
      %v518 = vld [vmem:[#allocation8 + $0x60] sm:$0xff]
      %v519 = vld [vmem:[#allocation8 + $0x68] sm:$0xff]
      %v520 = vld [vmem:[#allocation8 + $0x70] sm:$0xff]
      %v521 = vld [vmem:[#allocation8 + $0x78] sm:$0xff]
      %v522 = vld [vmem:[%s3] sm:$0x1]
      %v524 = vlaneseq
      %v525 = vshrl.u32 %v524, 7
      %v526 = vsub.s32 0, %v525
      %v527 = vrot.slane %v522, %v526
      %529 = vmatprep.subr.mxu0 0.0
      %530 = vmatpush1.msra.mxu0 %v521
      %531 = vmatprep.subr.mxu0 0.0
      %532 = vmatpush1.msra.mxu0 %v520
      %533 = vmatprep.subr.mxu0 0.0
      %534 = vmatpush1.msra.mxu0 %v519
      %535 = vmatprep.subr.mxu0 0.0
      %536 = vmatpush1.msra.mxu0 %v518
      %537 = vmatprep.subr.mxu0 0.0
      %538 = vmatpush1.msra.mxu0 %v517
      %539 = vmatprep.subr.mxu0 0.0
      %540 = vmatpush1.msra.mxu0 %v516
      %541 = vmatprep.subr.mxu0 0.0
      %542 = vmatpush1.msra.mxu0 %v515
      %543 = vmatprep.subr.mxu0 0.0
      %544 = vmatpush1.msra.mxu0 %v514
      %545 = vmatprep.subr.mxu0 0.0
      %546 = vmatpush1.msra.mxu0 %v513
      %547 = vmatprep.subr.mxu0 0.0
      %548 = vmatpush1.msra.mxu0 %v512
      %549 = vmatprep.subr.mxu0 0.0
      %550 = vmatpush1.msra.mxu0 %v511
      %551 = vmatprep.subr.mxu0 0.0
      %552 = vmatpush1.msra.mxu0 %v510
      %553 = vmatprep.subr.mxu0 0.0
      %554 = vmatpush1.msra.mxu0 %v509
      %555 = vmatprep.subr.mxu0 0.0
      %556 = vmatpush1.msra.mxu0 %v508
      %557 = vmatprep.subr.mxu0 0.0
      %558 = vmatpush1.msra.mxu0 %v507
      %559 = vmatprep.subr.mxu0 0.0
      %560 = vmatpush1.msra.mxu0 %v506
      %561 = vmatprep.subr.mxu0 0.0
      %562 = vmatpush2.msra.mxu0 0.0
      %563 = vmatprep.subr.mxu0 0.0
      %564 = vmatpush2.msra.mxu0 0.0
      %565 = vmatprep.subr.mxu0 0.0
      %566 = vmatpush2.msra.mxu0 0.0
      %567 = vmatprep.subr.mxu0 0.0
      %568 = vmatpush2.msra.mxu0 0.0
      %569 = vmatprep.subr.mxu0 0.0
      %570 = vmatpush2.msra.mxu0 0.0
      %571 = vmatprep.subr.mxu0 0.0
      %572 = vmatpush2.msra.mxu0 0.0
      %573 = vmatprep.subr.mxu0 0.0
      %574 = vmatpush2.msra.mxu0 0.0
      %575 = vmatprep.subr.mxu0 0.0
      %576 = vmatpush2.msra.mxu0 0.0
      %577 = vmatprep.subr.mxu0 0.0
      %578 = vmatpush2.msra.mxu0 0.0
      %579 = vmatprep.subr.mxu0 0.0
      %580 = vmatpush2.msra.mxu0 0.0
      %581 = vmatprep.subr.mxu0 0.0
      %582 = vmatpush2.msra.mxu0 0.0
      %583 = vmatprep.subr.mxu0 0.0
      %584 = vmatpush2.msra.mxu0 0.0
      %585 = vmatprep.subr.mxu0 0.0
      %586 = vmatpush2.msra.mxu0 0.0
      %587 = vmatprep.subr.mxu0 0.0
      %588 = vmatpush2.msra.mxu0 0.0
      %589 = vmatprep.subr.mxu0 0.0
      %590 = vmatpush2.msra.mxu0 0.0
      %591 = vmatprep.subr.mxu0 0.0
      %592 = vmatpush2.msra.mxu0 0.0
      %593 = vmatprep.mubr.f32.mxu0 0.0
      %594 = vmatmul.mubr.f32.gmra.mxu0 %v474
      %v595 = vpop.f32.mrf.mxu0
      %v596 = vadd.f32 %v527, %v595
      %v597 = vpop.f32.mrf.mxu0
      %598 = vmatprep.mubr.f32.mxu0 0.0
      %599 = vmatmul.mubr.f32.gmra.mxu0 %v476
      %v600 = vpop.f32.mrf.mxu0
      %v601 = vadd.f32 %v527, %v600
      %v602 = vpop.f32.mrf.mxu0
      %603 = vmatprep.mubr.f32.mxu0 0.0
      %604 = vmatmul.mubr.f32.gmra.mxu0 %v478
      %v605 = vpop.f32.mrf.mxu0
      %v606 = vadd.f32 %v527, %v605
      %v607 = vpop.f32.mrf.mxu0
      %608 = vmatprep.mubr.f32.mxu0 0.0
      %609 = vmatmul.mubr.f32.gmra.mxu0 %v480
      %v610 = vpop.f32.mrf.mxu0
      %v611 = vadd.f32 %v527, %v610
      %v612 = vpop.f32.mrf.mxu0
      %613 = vmatprep.mubr.f32.mxu0 0.0
      %614 = vmatmul.mubr.f32.gmra.mxu0 %v482
      %v615 = vpop.f32.mrf.mxu0
      %v616 = vadd.f32 %v527, %v615
      %v617 = vpop.f32.mrf.mxu0
      %618 = vmatprep.mubr.f32.mxu0 0.0
      %619 = vmatmul.mubr.f32.gmra.mxu0 %v484
      %v620 = vpop.f32.mrf.mxu0
      %v621 = vadd.f32 %v527, %v620
      %v622 = vpop.f32.mrf.mxu0
      %623 = vmatprep.mubr.f32.mxu0 0.0
      %624 = vmatmul.mubr.f32.gmra.mxu0 %v486
      %v625 = vpop.f32.mrf.mxu0
      %v626 = vadd.f32 %v527, %v625
      %v627 = vpop.f32.mrf.mxu0
      %628 = vmatprep.mubr.f32.mxu0 0.0
      %629 = vmatmul.mubr.f32.gmra.mxu0 %v488
      %v630 = vpop.f32.mrf.mxu0
      %v631 = vadd.f32 %v527, %v630
      %v632 = vpop.f32.mrf.mxu0
      %633 = vmatprep.mubr.f32.mxu0 0.0
      %634 = vmatmul.mubr.f32.gmra.mxu0 %v490
      %v635 = vpop.f32.mrf.mxu0
      %v636 = vadd.f32 %v527, %v635
      %v637 = vpop.f32.mrf.mxu0
      %638 = vmatprep.mubr.f32.mxu0 0.0
      %639 = vmatmul.mubr.f32.gmra.mxu0 %v492
      %v640 = vpop.f32.mrf.mxu0
      %v641 = vadd.f32 %v527, %v640
      %v642 = vpop.f32.mrf.mxu0
      %643 = vmatprep.mubr.f32.mxu0 0.0
      %644 = vmatmul.mubr.f32.gmra.mxu0 %v494
      %v645 = vpop.f32.mrf.mxu0
      %v646 = vadd.f32 %v527, %v645
      %v647 = vpop.f32.mrf.mxu0
      %648 = vmatprep.mubr.f32.mxu0 0.0
      %649 = vmatmul.mubr.f32.gmra.mxu0 %v496
      %v650 = vpop.f32.mrf.mxu0
      %v651 = vadd.f32 %v527, %v650
      %v652 = vpop.f32.mrf.mxu0
      %653 = vmatprep.mubr.f32.mxu0 0.0
      %654 = vmatmul.mubr.f32.gmra.mxu0 %v498
      %v655 = vpop.f32.mrf.mxu0
      %v656 = vadd.f32 %v527, %v655
      %v657 = vpop.f32.mrf.mxu0
      %658 = vmatprep.mubr.f32.mxu0 0.0
      %659 = vmatmul.mubr.f32.gmra.mxu0 %v500
      %v660 = vpop.f32.mrf.mxu0
      %v661 = vadd.f32 %v527, %v660
      %v662 = vpop.f32.mrf.mxu0
      %663 = vmatprep.mubr.f32.mxu0 0.0
      %664 = vmatmul.mubr.f32.gmra.mxu0 %v502
      %v665 = vpop.f32.mrf.mxu0
      %v666 = vadd.f32 %v527, %v665
      %v667 = vpop.f32.mrf.mxu0
      %668 = vmatprep.mubr.f32.mxu0 0.0
      %669 = vmatmul.mubr.f32.gmra.mxu0 %v504
      %v670 = vpop.f32.mrf.mxu0
      %v671 = vadd.f32 %v527, %v670
      %v672 = vpop.f32.mrf.mxu0
      %673 = vdwg.mxu0
      %674 = vst [vmem:[#allocation9] sm:$0xff] %v596
      %675 = vst [vmem:[#allocation9 + $0x10] sm:$0xff] %v601
      %676 = vst [vmem:[#allocation9 + $0x20] sm:$0xff] %v606
      %677 = vst [vmem:[#allocation9 + $0x30] sm:$0xff] %v611
      %678 = vst [vmem:[#allocation9 + $0x40] sm:$0xff] %v616
      %679 = vst [vmem:[#allocation9 + $0x50] sm:$0xff] %v621
      %680 = vst [vmem:[#allocation9 + $0x60] sm:$0xff] %v626
      %681 = vst [vmem:[#allocation9 + $0x70] sm:$0xff] %v631
      %682 = vst [vmem:[#allocation9 + $0x80] sm:$0xff] %v636
      %683 = vst [vmem:[#allocation9 + $0x90] sm:$0xff] %v641
      %684 = vst [vmem:[#allocation9 + $0xa0] sm:$0xff] %v646
      %685 = vst [vmem:[#allocation9 + $0xb0] sm:$0xff] %v651
      %686 = vst [vmem:[#allocation9 + $0xc0] sm:$0xff] %v656
      %687 = vst [vmem:[#allocation9 + $0xd0] sm:$0xff] %v661
      %688 = vst [vmem:[#allocation9 + $0xe0] sm:$0xff] %v666
      %689 = vst [vmem:[#allocation9 + $0xf0] sm:$0xff] %v671
      %690 = vmatprep.subr.mxu0 0.0
      %691 = vmatpush1.msra.mxu0 %v521
      %692 = vmatprep.subr.mxu0 0.0
      %693 = vmatpush1.msra.mxu0 %v520
      %694 = vmatprep.subr.mxu0 0.0
      %695 = vmatpush1.msra.mxu0 %v519
      %696 = vmatprep.subr.mxu0 0.0
      %697 = vmatpush1.msra.mxu0 %v518
      %698 = vmatprep.subr.mxu0 0.0
      %699 = vmatpush1.msra.mxu0 %v517
      %700 = vmatprep.subr.mxu0 0.0
      %701 = vmatpush1.msra.mxu0 %v516
      %702 = vmatprep.subr.mxu0 0.0
      %703 = vmatpush1.msra.mxu0 %v515
      %704 = vmatprep.subr.mxu0 0.0
      %705 = vmatpush1.msra.mxu0 %v514
      %706 = vmatprep.subr.mxu0 0.0
      %707 = vmatpush1.msra.mxu0 %v513
      %708 = vmatprep.subr.mxu0 0.0
      %709 = vmatpush1.msra.mxu0 %v512
      %710 = vmatprep.subr.mxu0 0.0
      %711 = vmatpush1.msra.mxu0 %v511
      %712 = vmatprep.subr.mxu0 0.0
      %713 = vmatpush1.msra.mxu0 %v510
      %714 = vmatprep.subr.mxu0 0.0
      %715 = vmatpush1.msra.mxu0 %v509
      %716 = vmatprep.subr.mxu0 0.0
      %717 = vmatpush1.msra.mxu0 %v508
      %718 = vmatprep.subr.mxu0 0.0
      %719 = vmatpush1.msra.mxu0 %v507
      %720 = vmatprep.subr.mxu0 0.0
      %721 = vmatpush1.msra.mxu0 %v506
      %722 = vmatprep.subr.mxu0 0.0
      %723 = vmatpush2.msra.mxu0 0.0
      %724 = vmatprep.subr.mxu0 0.0
      %725 = vmatpush2.msra.mxu0 0.0
      %726 = vmatprep.subr.mxu0 0.0
      %727 = vmatpush2.msra.mxu0 0.0
      %728 = vmatprep.subr.mxu0 0.0
      %729 = vmatpush2.msra.mxu0 0.0
      %730 = vmatprep.subr.mxu0 0.0
      %731 = vmatpush2.msra.mxu0 0.0
      %732 = vmatprep.subr.mxu0 0.0
      %733 = vmatpush2.msra.mxu0 0.0
      %734 = vmatprep.subr.mxu0 0.0
      %735 = vmatpush2.msra.mxu0 0.0
      %736 = vmatprep.subr.mxu0 0.0
      %737 = vmatpush2.msra.mxu0 0.0
      %738 = vmatprep.subr.mxu0 0.0
      %739 = vmatpush2.msra.mxu0 0.0
      %740 = vmatprep.subr.mxu0 0.0
      %741 = vmatpush2.msra.mxu0 0.0
      %742 = vmatprep.subr.mxu0 0.0
      %743 = vmatpush2.msra.mxu0 0.0
      %744 = vmatprep.subr.mxu0 0.0
      %745 = vmatpush2.msra.mxu0 0.0
      %746 = vmatprep.subr.mxu0 0.0
      %747 = vmatpush2.msra.mxu0 0.0
      %748 = vmatprep.subr.mxu0 0.0
      %749 = vmatpush2.msra.mxu0 0.0
      %750 = vmatprep.subr.mxu0 0.0
      %751 = vmatpush2.msra.mxu0 0.0
      %752 = vmatprep.subr.mxu0 0.0
      %753 = vmatpush2.msra.mxu0 0.0
      %754 = vmatprep.mubr.f32.mxu0 0.0
      %755 = vmatmul.mubr.f32.gmra.mxu0 %v475
      %v756 = vpop.f32.mrf.mxu0
      %v757 = vadd.f32 %v527, %v756
      %v758 = vpop.f32.mrf.mxu0
      %759 = vmatprep.mubr.f32.mxu0 0.0
      %760 = vmatmul.mubr.f32.gmra.mxu0 %v477
      %v761 = vpop.f32.mrf.mxu0
      %v762 = vadd.f32 %v527, %v761
      %v763 = vpop.f32.mrf.mxu0
      %764 = vmatprep.mubr.f32.mxu0 0.0
      %765 = vmatmul.mubr.f32.gmra.mxu0 %v479
      %v766 = vpop.f32.mrf.mxu0
      %v767 = vadd.f32 %v527, %v766
      %v768 = vpop.f32.mrf.mxu0
      %769 = vmatprep.mubr.f32.mxu0 0.0
      %770 = vmatmul.mubr.f32.gmra.mxu0 %v481
      %v771 = vpop.f32.mrf.mxu0
      %v772 = vadd.f32 %v527, %v771
      %v773 = vpop.f32.mrf.mxu0
      %774 = vmatprep.mubr.f32.mxu0 0.0
      %775 = vmatmul.mubr.f32.gmra.mxu0 %v483
      %v776 = vpop.f32.mrf.mxu0
      %v777 = vadd.f32 %v527, %v776
      %v778 = vpop.f32.mrf.mxu0
      %779 = vmatprep.mubr.f32.mxu0 0.0
      %780 = vmatmul.mubr.f32.gmra.mxu0 %v485
      %v781 = vpop.f32.mrf.mxu0
      %v782 = vadd.f32 %v527, %v781
      %v783 = vpop.f32.mrf.mxu0
      %784 = vmatprep.mubr.f32.mxu0 0.0
      %785 = vmatmul.mubr.f32.gmra.mxu0 %v487
      %v786 = vpop.f32.mrf.mxu0
      %v787 = vadd.f32 %v527, %v786
      %v788 = vpop.f32.mrf.mxu0
      %789 = vmatprep.mubr.f32.mxu0 0.0
      %790 = vmatmul.mubr.f32.gmra.mxu0 %v489
      %v791 = vpop.f32.mrf.mxu0
      %v792 = vadd.f32 %v527, %v791
      %v793 = vpop.f32.mrf.mxu0
      %794 = vmatprep.mubr.f32.mxu0 0.0
      %795 = vmatmul.mubr.f32.gmra.mxu0 %v491
      %v796 = vpop.f32.mrf.mxu0
      %v797 = vadd.f32 %v527, %v796
      %v798 = vpop.f32.mrf.mxu0
      %799 = vmatprep.mubr.f32.mxu0 0.0
      %800 = vmatmul.mubr.f32.gmra.mxu0 %v493
      %v801 = vpop.f32.mrf.mxu0
      %v802 = vadd.f32 %v527, %v801
      %v803 = vpop.f32.mrf.mxu0
      %804 = vmatprep.mubr.f32.mxu0 0.0
      %805 = vmatmul.mubr.f32.gmra.mxu0 %v495
      %v806 = vpop.f32.mrf.mxu0
      %v807 = vadd.f32 %v527, %v806
      %v808 = vpop.f32.mrf.mxu0
      %809 = vmatprep.mubr.f32.mxu0 0.0
      %810 = vmatmul.mubr.f32.gmra.mxu0 %v497
      %v811 = vpop.f32.mrf.mxu0
      %v812 = vadd.f32 %v527, %v811
      %v813 = vpop.f32.mrf.mxu0
      %814 = vmatprep.mubr.f32.mxu0 0.0
      %815 = vmatmul.mubr.f32.gmra.mxu0 %v499
      %v816 = vpop.f32.mrf.mxu0
      %v817 = vadd.f32 %v527, %v816
      %v818 = vpop.f32.mrf.mxu0
      %819 = vmatprep.mubr.f32.mxu0 0.0
      %820 = vmatmul.mubr.f32.gmra.mxu0 %v501
      %v821 = vpop.f32.mrf.mxu0
      %v822 = vadd.f32 %v527, %v821
      %v823 = vpop.f32.mrf.mxu0
      %824 = vmatprep.mubr.f32.mxu0 0.0
      %825 = vmatmul.mubr.f32.gmra.mxu0 %v503
      %v826 = vpop.f32.mrf.mxu0
      %v827 = vadd.f32 %v527, %v826
      %v828 = vpop.f32.mrf.mxu0
      %829 = vmatprep.mubr.f32.mxu0 0.0
      %830 = vmatmul.mubr.f32.gmra.mxu0 %v505
      %v831 = vpop.f32.mrf.mxu0
      %v832 = vadd.f32 %v527, %v831
      %v833 = vpop.f32.mrf.mxu0
      %834 = vdwg.mxu0
      %835 = vst [vmem:[#allocation9 + $0x8] sm:$0xff] %v757
      %836 = vst [vmem:[#allocation9 + $0x18] sm:$0xff] %v762
      %837 = vst [vmem:[#allocation9 + $0x28] sm:$0xff] %v767
      %838 = vst [vmem:[#allocation9 + $0x38] sm:$0xff] %v772
      %839 = vst [vmem:[#allocation9 + $0x48] sm:$0xff] %v777
      %840 = vst [vmem:[#allocation9 + $0x58] sm:$0xff] %v782
      %841 = vst [vmem:[#allocation9 + $0x68] sm:$0xff] %v787
      %842 = vst [vmem:[#allocation9 + $0x78] sm:$0xff] %v792
      %843 = vst [vmem:[#allocation9 + $0x88] sm:$0xff] %v797
      %844 = vst [vmem:[#allocation9 + $0x98] sm:$0xff] %v802
      %845 = vst [vmem:[#allocation9 + $0xa8] sm:$0xff] %v807
      %846 = vst [vmem:[#allocation9 + $0xb8] sm:$0xff] %v812
      %847 = vst [vmem:[#allocation9 + $0xc8] sm:$0xff] %v817
      %848 = vst [vmem:[#allocation9 + $0xd8] sm:$0xff] %v822
      %849 = vst [vmem:[#allocation9 + $0xe8] sm:$0xff] %v827
      %850 = vst [vmem:[#allocation9 + $0xf8] sm:$0xff] %v832
    $region37: #{tpu_custom_call.1} parent=1 // pred_fallthru
      _
    // Predicated region
    $region38: #{tpu_custom_call.1} parent=1 // pred_check
      _
    $region39: #{tpu_custom_call.1} parent=1 // pred_check_branch
      %852 = sbr.rel (0) target = $region41
    $region40: #{tpu_custom_call.1} parent=1 // pred_region
      %s854 = ssub.s32 4096, 4096
      %855 = vsyncadd [#allocation5], %s854
      %s856 = sshll.u32 [#allocation9], 4
      %s857 = int_to_ptr.vmem [resolvable:$true] %s856
      %862 = dma.vmem_to_hbm [thread:$0]  %s857, 4096, %s4, [#allocation5], 256, 256, 16
    $region41: #{tpu_custom_call.1} parent=1 // pred_fallthru
      _
    // Predicated region
    $region42: #{tpu_custom_call.1} parent=1 // pred_check
      _
    $region43: #{tpu_custom_call.1} parent=1 // pred_check_branch
      %864 = sbr.rel (0) target = $region45
    $region44: #{tpu_custom_call.1} parent=1 // pred_region
      %865 = dma.done [#allocation5], 4096
    $region45: #{tpu_custom_call.1} parent=1 // pred_fallthru
      _
    %866 = vsyncpa [#allocation4], 1
    %867 = vsyncpa [#allocation7], 1
    %868 = vsyncpa [#allocation5], 1

</llo_original>
